<compile_context>
chip_gen: v6e
topology: v6e:2x2x1
jax: 0.10.0
libtpu: 0.0.40
codegen_flags: <defaults>
</compile_context>

<pallas_src>
import math

import jax
import jax.numpy as jnp
import numpy as np
from jax.experimental import pallas as pl
from jax.experimental.pallas import tpu as pltpu


_LANE = 128
_NEG_LOGIT = -1e30  # finite "-inf" for padded softmax lanes (exp -> exactly 0 in f32)


def _round_up(x, m):
    return ((x + m - 1) // m) * m


# ----------------------------------------------------------------------------
# Parameter packing (one-time prep; cuts per-call DMA descriptor count).
# ----------------------------------------------------------------------------
def pack_params(weights, biases, param_dtype=jnp.bfloat16):
    """Packs per-layer weights/biases into a few operands.

    weights[i]: [in_i, out_i]   (transposed w.r.t. torch nn.Linear.weight)
    biases[i]:  [out_i]

    Weights are cast to `param_dtype` (bf16 recommended: the kernel is HBM-bound
    on weight bytes and the MXU consumes bf16 natively). Biases stay f32 (the
    epilogue is f32). The last weight/bias are lane-padded to a multiple of 128
    so the kernel output store is lane-dense; padded lanes get zero weights and
    a -1e30 bias so their softmax output is exactly zero.
    """
    n = len(weights)
    assert n >= 2 and len(biases) == n
    E, H = weights[0].shape
    M = weights[-1].shape[1]
    M_pad = _round_up(M, _LANE)
    for w in weights[1:-1]:
        assert w.shape == (H, H), "hidden layers must be square [hid, hid]"
    assert weights[-1].shape[0] == H

    w_first = weights[0].astype(param_dtype)                              # [E, H]
    w_hidden = (jnp.stack([w.astype(param_dtype) for w in weights[1:-1]])
                if n > 2 else None)                                       # [n-2, H, H]
    # TODO(synk): for tiny num_models the (M_pad - M) zero columns below are dead
    # HBM reads (~H*(M_pad-M) elements); build the padded logits in-register when
    # that matters (minor next to the hidden-layer weights).
    w_last = jnp.zeros((H, M_pad), param_dtype).at[:, :M].set(
        weights[-1].astype(param_dtype))                                  # [H, M_pad]

    maxW = max(H, M_pad)
    rows = []
    for i, b in enumerate(biases):
        if i < n - 1:
            row = jnp.zeros((maxW,), jnp.float32).at[: b.shape[0]].set(
                b.astype(jnp.float32))
        else:
            row = jnp.full((maxW,), _NEG_LOGIT, jnp.float32).at[:M].set(
                b.astype(jnp.float32))
        rows.append(row)
    b_packed = jnp.stack(rows)                                            # [n, maxW] f32

    return dict(
        w_first=w_first,
        w_hidden=w_hidden,
        w_last=w_last,
        b_packed=b_packed,
        dims=(int(E), int(H), int(M), int(M_pad), int(n)),
        param_dtype=param_dtype,
    )


# ----------------------------------------------------------------------------
# Kernel
# ----------------------------------------------------------------------------
def _make_kernel(*, H, M_pad, n_hidden, param_dtype):
    def kernel(*refs):
        if n_hidden > 0:
            x_ref, w0_ref, wh_ref, wl_ref, b_ref, out_ref = refs
        else:
            x_ref, w0_ref, wl_ref, b_ref, out_ref = refs
            wh_ref = None

        # Linear 0: MXU consumes param_dtype, accumulates in f32.
        h = jnp.dot(x_ref[...].astype(param_dtype), w0_ref[...],
                    preferred_element_type=jnp.float32)
        h = h + b_ref[0:1, :H]                       # f32 bias add (broadcast)

        # Hidden layers: ReLU -> Dropout(identity) -> Linear.
        # fori_loop (not an unrolled Python for) keeps vreg live ranges flat
        # per layer for large H / deep gating stacks.
        if n_hidden > 0:
            def body(j, h):
                h = jnp.maximum(h, 0.0)
                h = jnp.dot(h.astype(param_dtype), wh_ref[j],
                            preferred_element_type=jnp.float32)
                return h + b_ref[pl.ds(1 + j, 1), :H]
            h = jax.lax.fori_loop(0, n_hidden, body, h)

        # Final layer into the lane-padded logits (padded lanes get -1e30).
        h = jnp.maximum(h, 0.0)
        logits = jnp.dot(h.astype(param_dtype), wl_ref[...],
                         preferred_element_type=jnp.float32)
        logits = logits + b_ref[n_hidden + 1:n_hidden + 2, :M_pad]

        # f32 softmax over the padded lane dim; padded lanes -> exp == 0.
        m = jnp.max(logits, axis=-1, keepdims=True)
        e = jnp.exp(logits - m)
        denom = jnp.sum(e, axis=-1, keepdims=True)
        inv = pl.reciprocal(denom, approx=False)     # exact: rows sum to 1
        out_ref[...] = (e * inv).astype(out_ref.dtype)

    return kernel


# ----------------------------------------------------------------------------
# Wrappers
# ----------------------------------------------------------------------------
def moe_gating_pallas(x3d, packed):
    """x3d: [B, S, E] (full sequence). Returns [B, M]."""
    B, S, E = x3d.shape
    E_p, H, M, M_pad, n = packed["dims"]
    assert E == E_p
    n_hidden = n - 2
    param_dtype = packed["param_dtype"]

    # Pad batch to a full sublane group so stores/vreg ops are unmasked.
    sub = 8 if jnp.dtype(param_dtype).itemsize >= 4 else 16
    B_pad = _round_up(max(B, 1), sub)

    # Last-token slice in the wrapper: a tiny [B, E] gather whose DMA the
    # Pallas prologue overlaps with the weight loads.
    x_last = x3d[:, -1, :]
    if B_pad != B:
        x_last = jnp.pad(x_last, ((0, B_pad - B), (0, 0)))

    kernel = _make_kernel(H=H, M_pad=M_pad, n_hidden=n_hidden,
                          param_dtype=param_dtype)

    operands = [x_last, packed["w_first"]]
    if n_hidden > 0:
        operands.append(packed["w_hidden"])
    operands += [packed["w_last"], packed["b_packed"]]

    vmem = pl.BlockSpec(memory_space=pltpu.MemorySpace.VMEM)
    in_specs = [vmem] * len(operands)

    w_itemsize = jnp.dtype(param_dtype).itemsize
    w_elems = E * H + n_hidden * H * H + H * M_pad
    maxW = packed["b_packed"].shape[1]
    in_bytes = (x_last.size * x_last.dtype.itemsize
                + w_elems * w_itemsize
                + n * maxW * 4)
    out_bytes = B_pad * M_pad * 4
    # Scoped-VMEM budget: resident operands + output, x2 for buffering/layout
    # headroom, floored at the 32 MiB default, capped below physical VMEM.
    vmem_limit = int(min(max(2 * (in_bytes + out_bytes) + (1 << 20), 32 << 20),
                         100 << 20))

    flops = 2 * B_pad * w_elems + 6 * B_pad * M_pad
    cost = pl.CostEstimate(flops=int(flops),
                           transcendentals=int(B_pad * M_pad),
                           bytes_accessed=int(in_bytes + out_bytes))

    # TODO(synk): for v7x (64 MiB VMEM) at large H, stream the hidden weights
    # with a K-tiled reduction grid (tk >= 512, f32 VMEM accumulator,
    # pl.Buffered(3) weight specs) instead of whole-weights-in-VMEM, and add a
    # leading "parallel" batch grid axis so the two TensorCores split B.
    # TODO(synk): optional int8 (v5e/v6e) / fp8 (v7x) weight path with the
    # per-layer scale folded into the f32 bias epilogue.
    out = pl.pallas_call(
        kernel,
        out_shape=jax.ShapeDtypeStruct((B_pad, M_pad), jnp.float32),
        in_specs=in_specs,
        out_specs=vmem,
        compiler_params=pltpu.CompilerParams(vmem_limit_bytes=vmem_limit),
        cost_estimate=cost,
    )(*operands)

    return out[:B, :M]   # drop sublane (batch) and lane (num_models) padding


def moe_gating_forward(x, packed):
    """Full MoeGating.forward semantics (3D or 2D input)."""
    if x.ndim == 3:
        out = moe_gating_pallas(x, packed)          # [B, M]
        return out[:, None, :]                      # [B, 1, M]  (unsqueeze(1))
    else:
        out = moe_gating_pallas(x[None], packed)    # x[-1] == x[None][:, -1]
        return out                                  # [1, M]     (unsqueeze(0))


# ----------------------------------------------------------------------------
# Params + pure-JAX references
# ----------------------------------------------------------------------------
def init_params(key, emb_size, hid_size, num_models, num_layers):
    """PyTorch-style nn.Linear init; weights returned as [in, out]."""
    dims = [emb_size] + [hid_size] * num_layers + [num_models]
    weights, biases = [], []
    for i in range(len(dims) - 1):
        fan_in, fan_out = dims[i], dims[i + 1]
        bound = 1.0 / math.sqrt(fan_in)
        key, kw, kb = jax.random.split(key, 3)
        weights.append(jax.random.uniform(kw, (fan_in, fan_out), jnp.float32,
                                          -bound, bound))
        biases.append(jax.random.uniform(kb, (fan_out,), jnp.float32,
                                         -bound, bound))
    return weights, biases


def reference_forward(x, weights, biases):
    """Pure-f32 reference mirroring the torch module (eval mode)."""
    if x.ndim == 3:
        h = x[:, -1, :][:, None, :]
    else:
        h = x[-1][None, :]
    n = len(weights)
    for i, (w, b) in enumerate(zip(weights, biases)):
        h = h @ w + b
        if i < n - 1:
            h = jnp.maximum(h, 0.0)
    return jax.nn.softmax(h, axis=-1)


def reference_forward_cast(x, weights, biases, param_dtype):
    """Reference with the SAME cast points as the kernel: matmul operands in
    param_dtype, f32 accumulation, f32 bias/ReLU/softmax epilogue."""
    if x.ndim == 3:
        h = x[:, -1, :][:, None, :].astype(jnp.float32)
    else:
        h = x[-1][None, :].astype(jnp.float32)
    n = len(weights)
    for i, (w, b) in enumerate(zip(weights, biases)):
        h = jnp.dot(h.astype(param_dtype), w.astype(param_dtype),
                    preferred_element_type=jnp.float32) + b.astype(jnp.float32)
        if i < n - 1:
            h = jnp.maximum(h, 0.0)
    return jax.nn.softmax(h, axis=-1)


if __name__ == "__main__":
    batch, seq, emb_size = 2, 8, 32
    hid_size, num_models, num_layers = 32, 8, 2   # dropout: inference identity

    key = jax.random.PRNGKey(0)
    key, kx = jax.random.split(key)
    x = jax.random.normal(kx, (batch, seq, emb_size), jnp.float32)

    weights, biases = init_params(key, emb_size, hid_size, num_models, num_layers)

    # --- f32 params: exactness vs. the pure-JAX reference (3D path). --------
    packed_f32 = pack_params(weights, biases, param_dtype=jnp.float32)
    out = jax.block_until_ready(moe_gating_forward(x, packed_f32))
    ref = reference_forward(x, weights, biases)
    np.testing.assert_allclose(np.asarray(out), np.asarray(ref),
                               rtol=2e-3, atol=2e-3)
    assert out.shape == (batch, 1, num_models)
    np.testing.assert_allclose(np.asarray(out).sum(axis=-1), 1.0, atol=1e-5)

    # --- 2D path: [S, E] -> [1, M]. ------------------------------------------
    out2d = jax.block_until_ready(moe_gating_forward(x[0], packed_f32))
    ref2d = reference_forward(x[0], weights, biases)
    np.testing.assert_allclose(np.asarray(out2d), np.asarray(ref2d),
                               rtol=2e-3, atol=2e-3)
    assert out2d.shape == (1, num_models)

    # --- bf16 params (default / recommended on all generations): checked
    #     against a reference with the same cast points, plus a loose check
    #     against the f32 reference and an exact-softmax row-sum check.
    packed_bf16 = pack_params(weights, biases)            # param_dtype=bf16
    out_bf16 = jax.block_until_ready(moe_gating_forward(x, packed_bf16))
    ref_bf16 = reference_forward_cast(x, weights, biases, jnp.bfloat16)
    np.testing.assert_allclose(np.asarray(out_bf16), np.asarray(ref_bf16),
                               rtol=2e-3, atol=2e-3)
    np.testing.assert_allclose(np.asarray(out_bf16), np.asarray(ref), atol=5e-2)
    np.testing.assert_allclose(np.asarray(out_bf16).sum(axis=-1), 1.0, atol=1e-4)
    assert out_bf16.shape == (batch, 1, num_models)

    # --- multi-trip hidden-layer fori_loop (num_layers=3 -> 2 hidden layers).
    w3, b3 = init_params(jax.random.PRNGKey(1), emb_size, hid_size, num_models, 3)
    out3 = jax.block_until_ready(
        moe_gating_forward(x, pack_params(w3, b3, param_dtype=jnp.float32)))
    np.testing.assert_allclose(np.asarray(out3),
                               np.asarray(reference_forward(x, w3, b3)),
                               rtol=2e-3, atol=2e-3)

    # --- no-hidden-layer branch (num_layers=1). ------------------------------
    w1, b1 = init_params(jax.random.PRNGKey(2), emb_size, hid_size, num_models, 1)
    out1 = jax.block_until_ready(
        moe_gating_forward(x, pack_params(w1, b1, param_dtype=jnp.float32)))
    np.testing.assert_allclose(np.asarray(out1),
                               np.asarray(reference_forward(x, w1, b1)),
                               rtol=2e-3, atol=2e-3)

    print("KERNEL_OK")
</pallas_src>

<mosaic_0001>
module attributes {stable_mosaic.version = 11 : i64} {
  func.func @kernel(%arg0: memref<8x32xf32, #tpu.memory_space<vmem>>, %arg1: memref<32x32xf32, #tpu.memory_space<vmem>>, %arg2: memref<1x32x32xf32, #tpu.memory_space<vmem>>, %arg3: memref<32x128xf32, #tpu.memory_space<vmem>>, %arg4: memref<3x128xf32, #tpu.memory_space<vmem>>, %arg5: memref<8x128xf32, #tpu.memory_space<vmem>>) attributes {dimension_semantics = [], scalar_prefetch = 0 : i64, scratch_operands = 0 : i64, tpu.core_type = #tpu.core_type<tc>} {
    %c0 = arith.constant 0 : index
    %c0_0 = arith.constant 0 : index
    %0 = vector.load %arg0[%c0, %c0_0] : memref<8x32xf32, #tpu.memory_space<vmem>>, vector<8x32xf32>
    %c0_1 = arith.constant 0 : index
    %c0_2 = arith.constant 0 : index
    %1 = vector.load %arg1[%c0_1, %c0_2] : memref<32x32xf32, #tpu.memory_space<vmem>>, vector<32x32xf32>
    %cst = arith.constant dense<0.000000e+00> : vector<8x32xf32>
    %2 = tpu.matmul %0, %1, %cst {dimension_numbers = #tpu.dot_dimension_numbers<[1], [0], [0], [1], [0, 0, 1, 1], [], []>} : vector<8x32xf32>, vector<32x32xf32>, vector<8x32xf32> -> vector<8x32xf32>
    %c0_3 = arith.constant 0 : index
    %c0_4 = arith.constant 0 : index
    %3 = vector.load %arg4[%c0_3, %c0_4] : memref<3x128xf32, #tpu.memory_space<vmem>>, vector<1x32xf32>
    %4 = vector.broadcast %3 : vector<1x32xf32> to vector<8x32xf32>
    %5 = arith.addf %2, %4 : vector<8x32xf32>
    %c0_i32 = arith.constant 0 : i32
    %cst_5 = arith.constant 0.000000e+00 : f32
    %6 = vector.broadcast %cst_5 : f32 to vector<8x32xf32>
    %7 = arith.maximumf %5, %6 : vector<8x32xf32>
    %8 = arith.index_cast %c0_i32 : i32 to index
    %c0_6 = arith.constant 0 : index
    %c0_7 = arith.constant 0 : index
    %9 = vector.load %arg2[%8, %c0_6, %c0_7] : memref<1x32x32xf32, #tpu.memory_space<vmem>>, vector<1x32x32xf32>
    %10 = vector.shape_cast %9 : vector<1x32x32xf32> to vector<32x32xf32>
    %cst_8 = arith.constant dense<0.000000e+00> : vector<8x32xf32>
    %11 = tpu.matmul %7, %10, %cst_8 {dimension_numbers = #tpu.dot_dimension_numbers<[1], [0], [0], [1], [0, 0, 1, 1], [], []>} : vector<8x32xf32>, vector<32x32xf32>, vector<8x32xf32> -> vector<8x32xf32>
    %c1_i32 = arith.constant 1 : i32
    %12 = arith.addi %c1_i32, %c0_i32 : i32
    %13 = arith.index_cast %12 : i32 to index
    %c0_9 = arith.constant 0 : index
    %14 = vector.load %arg4[%13, %c0_9] : memref<3x128xf32, #tpu.memory_space<vmem>>, vector<1x32xf32>
    %15 = vector.broadcast %14 : vector<1x32xf32> to vector<8x32xf32>
    %16 = arith.addf %11, %15 : vector<8x32xf32>
    %c1_i32_10 = arith.constant 1 : i32
    %cst_11 = arith.constant 0.000000e+00 : f32
    %17 = vector.broadcast %cst_11 : f32 to vector<8x32xf32>
    %18 = arith.maximumf %16, %17 : vector<8x32xf32>
    %c0_12 = arith.constant 0 : index
    %c0_13 = arith.constant 0 : index
    %19 = vector.load %arg3[%c0_12, %c0_13] : memref<32x128xf32, #tpu.memory_space<vmem>>, vector<32x128xf32>
    %cst_14 = arith.constant dense<0.000000e+00> : vector<8x128xf32>
    %20 = tpu.matmul %18, %19, %cst_14 {dimension_numbers = #tpu.dot_dimension_numbers<[1], [0], [0], [1], [0, 0, 1, 1], [], []>} : vector<8x32xf32>, vector<32x128xf32>, vector<8x128xf32> -> vector<8x128xf32>
    %c2 = arith.constant 2 : index
    %c0_15 = arith.constant 0 : index
    %21 = vector.load %arg4[%c2, %c0_15] : memref<3x128xf32, #tpu.memory_space<vmem>>, vector<1x128xf32>
    %22 = vector.broadcast %21 : vector<1x128xf32> to vector<8x128xf32>
    %23 = arith.addf %20, %22 : vector<8x128xf32>
    %cst_16 = arith.constant dense<0xFF800000> : vector<8xf32>
    %24 = vector.multi_reduction <maximumf>, %23, %cst_16 [1] : vector<8x128xf32> to vector<8xf32>
    %25 = vector.shape_cast %24 : vector<8xf32> to vector<8x1xf32>
    %26 = vector.broadcast %25 : vector<8x1xf32> to vector<8x128xf32>
    %27 = arith.subf %23, %26 : vector<8x128xf32>
    %28 = math.exp %27 : vector<8x128xf32>
    %cst_17 = arith.constant dense<0.000000e+00> : vector<8xf32>
    %29 = vector.multi_reduction <add>, %28, %cst_17 [1] : vector<8x128xf32> to vector<8xf32>
    %30 = vector.shape_cast %29 : vector<8xf32> to vector<8x1xf32>
    %31 = tpu.reciprocal %30 : vector<8x1xf32> -> vector<8x1xf32>
    %32 = vector.broadcast %31 : vector<8x1xf32> to vector<8x128xf32>
    %33 = arith.mulf %28, %32 : vector<8x128xf32>
    %c0_18 = arith.constant 0 : index
    %c0_19 = arith.constant 0 : index
    %34 = vector.load %arg5[%c0_18, %c0_19] : memref<8x128xf32, #tpu.memory_space<vmem>>, vector<8x128xf32>
    tpu.vector_store %arg5[%c0_18, %c0_19], %33 {strides = array<i32>} : memref<8x128xf32, #tpu.memory_space<vmem>>, vector<8x128xf32>,
    return
  }
}

</mosaic_0001>

<llo_original>
// kernel: tpu_custom_call.1
$region0: #{tpu_custom_call.1}
  #allocation0 [shape = 'u32[]', space=smem, size = 0x4, offset = 0x4, fixed_abs, tag = 'smem constant byte address 0x4 - core index']
  #allocation1 [shape = 'u32[144,128]{1,0:T(1,128)}', space=vmem, size = 0x12000, scoped, tag = 'internal scratch']
  %s0 = inlined_call_operand.hbm [shape: f32[8,32], index: 0, kind: input, shape index: {}]
  %s1 = inlined_call_operand.hbm [shape: f32[32,32], index: 1, kind: input, shape index: {}]
  %s2 = inlined_call_operand.hbm [shape: f32[1,32,32], index: 2, kind: input, shape index: {}]
  %s3 = inlined_call_operand.hbm [shape: f32[32,128], index: 3, kind: input, shape index: {}]
  %s4 = inlined_call_operand.vmem [shape: f32[3,128], index: 4, kind: input, shape index: {}]
  %s5 = inlined_call_operand.hbm [shape: f32[8,128], index: 5, kind: output, shape index: {}]
  %s6 = sld [smem:[#allocation0]]
  $region46: #{tpu_custom_call.1} parent=0
    _
  %s8 = ssub.s32 1, %s6
  %s9 = scalar_select 0, %s8, %s6
  $region1: #{tpu_custom_call.1} parent=0
    #allocation2 [shape = 'u8[4096]{0}', space=vmem, size = 0x1000, scoped, tag = 'input window, operand 0, single buffered']
    #allocation3 [shape = 's32[1]{0}', space=sflag, size = 0x4, scoped, tag = 'scoped memory for tpu_custom_call.1']
    #allocation4 [shape = 's32[1]{0}', space=sflag, size = 0x4, scoped, tag = 'scoped memory for tpu_custom_call.1']
    #allocation5 [shape = 'u8[16384]{0}', space=vmem, size = 0x4000, scoped, tag = 'input window, operand 1, single buffered']
    #allocation6 [shape = 's32[1]{0}', space=sflag, size = 0x4, scoped, tag = 'scoped memory for tpu_custom_call.1']
    #allocation7 [shape = 'u8[16384]{0}', space=vmem, size = 0x4000, scoped, tag = 'input window, operand 2, single buffered']
    #allocation8 [shape = 'u8[16384]{0}', space=vmem, size = 0x4000, scoped, tag = 'input window, operand 3, single buffered']
    #allocation9 [shape = 's32[1]{0}', space=sflag, size = 0x4, scoped, tag = 'scoped memory for tpu_custom_call.1']
    #allocation10 [shape = 'u8[4096]{0}', space=vmem, size = 0x1000, scoped, tag = 'output window, operand 0, single buffered']
    %10 = vsyncpa [#allocation3], 0
    %11 = vsyncpa [#allocation6], 0
    %12 = vsyncpa [#allocation9], 0
    %13 = vsyncpa [#allocation4], 0
    // Predicated region
    $region2: #{tpu_custom_call.1} parent=1 // pred_check
      _
    $region3: #{tpu_custom_call.1} parent=1 // pred_check_branch
      %15 = sbr.rel (0) target = $region5
    $region4: #{tpu_custom_call.1} parent=1 // pred_region
      %s17 = ssub.s32 128, 128
      %18 = vsyncadd [#allocation3], %s17
      %s20 = sshll.u32 [#allocation2], 4
      %s21 = int_to_ptr.vmem [resolvable:$true] %s20
      %23 = dma.hbm_to_vmem [thread:$0]  %s0, 128, %s21, [#allocation3]
    $region5: #{tpu_custom_call.1} parent=1 // pred_fallthru
      _
    // Predicated region
    $region6: #{tpu_custom_call.1} parent=1 // pred_check
      _
    $region7: #{tpu_custom_call.1} parent=1 // pred_check_branch
      %25 = sbr.rel (0) target = $region9
    $region8: #{tpu_custom_call.1} parent=1 // pred_region
      %s27 = ssub.s32 512, 512
      %28 = vsyncadd [#allocation6], %s27
      %s29 = sshll.u32 [#allocation5], 4
      %s30 = int_to_ptr.vmem [resolvable:$true] %s29
      %35 = dma.hbm_to_vmem [thread:$0]  %s1, 512, %s30, [#allocation6], 128, 128, 8
    $region9: #{tpu_custom_call.1} parent=1 // pred_fallthru
      _
    // Predicated region
    $region10: #{tpu_custom_call.1} parent=1 // pred_check
      _
    $region11: #{tpu_custom_call.1} parent=1 // pred_check_branch
      %37 = sbr.rel (0) target = $region13
    $region12: #{tpu_custom_call.1} parent=1 // pred_region
      %s39 = ssub.s32 512, 512
      %40 = vsyncadd [#allocation6], %s39
      %s41 = sshll.u32 [#allocation7], 4
      %s42 = int_to_ptr.vmem [resolvable:$true] %s41
      %47 = dma.hbm_to_vmem [thread:$0]  %s2, 512, %s42, [#allocation6], 128, 128, 8
    $region13: #{tpu_custom_call.1} parent=1 // pred_fallthru
      _
    // Predicated region
    $region14: #{tpu_custom_call.1} parent=1 // pred_check
      _
    $region15: #{tpu_custom_call.1} parent=1 // pred_check_branch
      %49 = sbr.rel (0) target = $region17
    $region16: #{tpu_custom_call.1} parent=1 // pred_region
      %s51 = ssub.s32 512, 512
      %52 = vsyncadd [#allocation9], %s51
      %s53 = sshll.u32 [#allocation8], 4
      %s54 = int_to_ptr.vmem [resolvable:$true] %s53
      %59 = dma.hbm_to_vmem [thread:$0]  %s3, 512, %s54, [#allocation9], 128, 128, 8
    $region17: #{tpu_custom_call.1} parent=1 // pred_fallthru
      _
    // Predicated region
    $region18: #{tpu_custom_call.1} parent=1 // pred_check
      _
    $region19: #{tpu_custom_call.1} parent=1 // pred_check_branch
      %61 = sbr.rel (0) target = $region21
    $region20: #{tpu_custom_call.1} parent=1 // pred_region
      _
    $region21: #{tpu_custom_call.1} parent=1 // pred_fallthru
      _
    // Predicated region
    $region22: #{tpu_custom_call.1} parent=1 // pred_check
      _
    $region23: #{tpu_custom_call.1} parent=1 // pred_check_branch
      %63 = sbr.rel (0) target = $region25
    $region24: #{tpu_custom_call.1} parent=1 // pred_region
      %64 = dma.done [#allocation3], 128
    $region25: #{tpu_custom_call.1} parent=1 // pred_fallthru
      _
    // Predicated region
    $region26: #{tpu_custom_call.1} parent=1 // pred_check
      _
    $region27: #{tpu_custom_call.1} parent=1 // pred_check_branch
      %66 = sbr.rel (0) target = $region29
    $region28: #{tpu_custom_call.1} parent=1 // pred_region
      %67 = dma.done [#allocation6], 512
    $region29: #{tpu_custom_call.1} parent=1 // pred_fallthru
      _
    // Predicated region
    $region30: #{tpu_custom_call.1} parent=1 // pred_check
      _
    $region31: #{tpu_custom_call.1} parent=1 // pred_check_branch
      %69 = sbr.rel (0) target = $region33
    $region32: #{tpu_custom_call.1} parent=1 // pred_region
      %70 = dma.done [#allocation6], 512
    $region33: #{tpu_custom_call.1} parent=1 // pred_fallthru
      _
    // Predicated region
    $region34: #{tpu_custom_call.1} parent=1 // pred_check
      _
    $region35: #{tpu_custom_call.1} parent=1 // pred_check_branch
      %72 = sbr.rel (0) target = $region37
    $region36: #{tpu_custom_call.1} parent=1 // pred_region
      %73 = dma.done [#allocation9], 512
    $region37: #{tpu_custom_call.1} parent=1 // pred_fallthru
      _
    %v74 = vld [vmem:[#allocation2] sm:$0xff]
    %v75 = vld [vmem:[#allocation5] sm:$0xff]
    %v76 = vld [vmem:[#allocation5 + $0x8] sm:$0xff]
    %v77 = vld [vmem:[#allocation5 + $0x10] sm:$0xff]
    %v78 = vld [vmem:[#allocation5 + $0x18] sm:$0xff]
    %v79 = vld [vmem:[%s4] sm:$0x1]
    %v80 = vlaneseq
    %v81 = vshrl.u32 %v80, 7
    %v82 = vsub.s32 0, %v81
    %v83 = vrot.slane %v79, %v82
    %vm84 = vcmask 261120
    %v86 = vsel %vm84, %v74, 0
    %88 = vmatprep.subr.mxu0 0.0
    %89 = vmatpush1.msra.mxu0 0.0
    %90 = vmatprep.subr.mxu0 0.0
    %91 = vmatpush1.msra.mxu0 0.0
    %92 = vmatprep.subr.mxu0 0.0
    %93 = vmatpush1.msra.mxu0 0.0
    %94 = vmatprep.subr.mxu0 0.0
    %95 = vmatpush1.msra.mxu0 0.0
    %96 = vmatprep.subr.mxu0 0.0
    %97 = vmatpush1.msra.mxu0 0.0
    %98 = vmatprep.subr.mxu0 0.0
    %99 = vmatpush1.msra.mxu0 0.0
    %100 = vmatprep.subr.mxu0 0.0
    %101 = vmatpush1.msra.mxu0 0.0
    %102 = vmatprep.subr.mxu0 0.0
    %103 = vmatpush1.msra.mxu0 0.0
    %104 = vmatprep.subr.mxu0 0.0
    %105 = vmatpush1.msra.mxu0 0.0
    %106 = vmatprep.subr.mxu0 0.0
    %107 = vmatpush1.msra.mxu0 0.0
    %108 = vmatprep.subr.mxu0 0.0
    %109 = vmatpush1.msra.mxu0 0.0
    %110 = vmatprep.subr.mxu0 0.0
    %111 = vmatpush1.msra.mxu0 0.0
    %112 = vmatprep.subr.mxu0 0.0
    %113 = vmatpush1.msra.mxu0 %v78
    %114 = vmatprep.subr.mxu0 0.0
    %115 = vmatpush1.msra.mxu0 %v77
    %116 = vmatprep.subr.mxu0 0.0
    %117 = vmatpush1.msra.mxu0 %v76
    %118 = vmatprep.subr.mxu0 0.0
    %119 = vmatpush1.msra.mxu0 %v75
    %120 = vmatprep.subr.mxu0 0.0
    %121 = vmatpush2.msra.mxu0 0.0
    %122 = vmatprep.subr.mxu0 0.0
    %123 = vmatpush2.msra.mxu0 0.0
    %124 = vmatprep.subr.mxu0 0.0
    %125 = vmatpush2.msra.mxu0 0.0
    %126 = vmatprep.subr.mxu0 0.0
    %127 = vmatpush2.msra.mxu0 0.0
    %128 = vmatprep.subr.mxu0 0.0
    %129 = vmatpush2.msra.mxu0 0.0
    %130 = vmatprep.subr.mxu0 0.0
    %131 = vmatpush2.msra.mxu0 0.0
    %132 = vmatprep.subr.mxu0 0.0
    %133 = vmatpush2.msra.mxu0 0.0
    %134 = vmatprep.subr.mxu0 0.0
    %135 = vmatpush2.msra.mxu0 0.0
    %136 = vmatprep.subr.mxu0 0.0
    %137 = vmatpush2.msra.mxu0 0.0
    %138 = vmatprep.subr.mxu0 0.0
    %139 = vmatpush2.msra.mxu0 0.0
    %140 = vmatprep.subr.mxu0 0.0
    %141 = vmatpush2.msra.mxu0 0.0
    %142 = vmatprep.subr.mxu0 0.0
    %143 = vmatpush2.msra.mxu0 0.0
    %144 = vmatprep.subr.mxu0 0.0
    %145 = vmatpush2.msra.mxu0 0.0
    %146 = vmatprep.subr.mxu0 0.0
    %147 = vmatpush2.msra.mxu0 0.0
    %148 = vmatprep.subr.mxu0 0.0
    %149 = vmatpush2.msra.mxu0 0.0
    %150 = vmatprep.subr.mxu0 0.0
    %151 = vmatpush2.msra.mxu0 0.0
    %152 = vmatprep.mubr.f32.mxu0 0.0
    %153 = vmatmul.mubr.f32.gmra.mxu0 %v86
    %v154 = vpop.f32.mrf.mxu0
    %v155 = vadd.f32 %v83, %v154
    %v156 = vpop.f32.mrf.mxu0
    %157 = vdwg.mxu0
    %v158 = vmax.f32 %v155, 0.0
    %v159 = vld [vmem:[#allocation7] sm:$0xff]
    %v160 = vld [vmem:[#allocation7 + $0x8] sm:$0xff]
    %v161 = vld [vmem:[#allocation7 + $0x10] sm:$0xff]
    %v162 = vld [vmem:[#allocation7 + $0x18] sm:$0xff]
    %v163 = vld [vmem:[%s4 + $0x1] sm:$0x1]
    %v164 = vlaneseq
    %v165 = vshrl.u32 %v164, 7
    %v166 = vsub.s32 0, %v165
    %v167 = vrot.slane %v163, %v166
    %v169 = vsel %vm84, %v158, 0
    %171 = vmatprep.subr.mxu0 0.0
    %172 = vmatpush1.msra.mxu0 0.0
    %173 = vmatprep.subr.mxu0 0.0
    %174 = vmatpush1.msra.mxu0 0.0
    %175 = vmatprep.subr.mxu0 0.0
    %176 = vmatpush1.msra.mxu0 0.0
    %177 = vmatprep.subr.mxu0 0.0
    %178 = vmatpush1.msra.mxu0 0.0
    %179 = vmatprep.subr.mxu0 0.0
    %180 = vmatpush1.msra.mxu0 0.0
    %181 = vmatprep.subr.mxu0 0.0
    %182 = vmatpush1.msra.mxu0 0.0
    %183 = vmatprep.subr.mxu0 0.0
    %184 = vmatpush1.msra.mxu0 0.0
    %185 = vmatprep.subr.mxu0 0.0
    %186 = vmatpush1.msra.mxu0 0.0
    %187 = vmatprep.subr.mxu0 0.0
    %188 = vmatpush1.msra.mxu0 0.0
    %189 = vmatprep.subr.mxu0 0.0
    %190 = vmatpush1.msra.mxu0 0.0
    %191 = vmatprep.subr.mxu0 0.0
    %192 = vmatpush1.msra.mxu0 0.0
    %193 = vmatprep.subr.mxu0 0.0
    %194 = vmatpush1.msra.mxu0 0.0
    %195 = vmatprep.subr.mxu0 0.0
    %196 = vmatpush1.msra.mxu0 %v162
    %197 = vmatprep.subr.mxu0 0.0
    %198 = vmatpush1.msra.mxu0 %v161
    %199 = vmatprep.subr.mxu0 0.0
    %200 = vmatpush1.msra.mxu0 %v160
    %201 = vmatprep.subr.mxu0 0.0
    %202 = vmatpush1.msra.mxu0 %v159
    %203 = vmatprep.subr.mxu0 0.0
    %204 = vmatpush2.msra.mxu0 0.0
    %205 = vmatprep.subr.mxu0 0.0
    %206 = vmatpush2.msra.mxu0 0.0
    %207 = vmatprep.subr.mxu0 0.0
    %208 = vmatpush2.msra.mxu0 0.0
    %209 = vmatprep.subr.mxu0 0.0
    %210 = vmatpush2.msra.mxu0 0.0
    %211 = vmatprep.subr.mxu0 0.0
    %212 = vmatpush2.msra.mxu0 0.0
    %213 = vmatprep.subr.mxu0 0.0
    %214 = vmatpush2.msra.mxu0 0.0
    %215 = vmatprep.subr.mxu0 0.0
    %216 = vmatpush2.msra.mxu0 0.0
    %217 = vmatprep.subr.mxu0 0.0
    %218 = vmatpush2.msra.mxu0 0.0
    %219 = vmatprep.subr.mxu0 0.0
    %220 = vmatpush2.msra.mxu0 0.0
    %221 = vmatprep.subr.mxu0 0.0
    %222 = vmatpush2.msra.mxu0 0.0
    %223 = vmatprep.subr.mxu0 0.0
    %224 = vmatpush2.msra.mxu0 0.0
    %225 = vmatprep.subr.mxu0 0.0
    %226 = vmatpush2.msra.mxu0 0.0
    %227 = vmatprep.subr.mxu0 0.0
    %228 = vmatpush2.msra.mxu0 0.0
    %229 = vmatprep.subr.mxu0 0.0
    %230 = vmatpush2.msra.mxu0 0.0
    %231 = vmatprep.subr.mxu0 0.0
    %232 = vmatpush2.msra.mxu0 0.0
    %233 = vmatprep.subr.mxu0 0.0
    %234 = vmatpush2.msra.mxu0 0.0
    %235 = vmatprep.mubr.f32.mxu0 0.0
    %236 = vmatmul.mubr.f32.gmra.mxu0 %v169
    %v237 = vpop.f32.mrf.mxu0
    %v238 = vadd.f32 %v167, %v237
    %v239 = vpop.f32.mrf.mxu0
    %240 = vdwg.mxu0
    %v241 = vmax.f32 %v238, 0.0
    %v242 = vld [vmem:[#allocation8] sm:$0xff]
    %v243 = vld [vmem:[#allocation8 + $0x8] sm:$0xff]
    %v244 = vld [vmem:[#allocation8 + $0x10] sm:$0xff]
    %v245 = vld [vmem:[#allocation8 + $0x18] sm:$0xff]
    %v246 = vld [vmem:[%s4 + $0x2] sm:$0x1]
    %v247 = vlaneseq
    %v248 = vshrl.u32 %v247, 7
    %v249 = vsub.s32 0, %v248
    %v250 = vrot.slane %v246, %v249
    %v252 = vsel %vm84, %v241, 0
    %254 = vmatprep.subr.mxu0 0.0
    %255 = vmatpush1.msra.mxu0 0.0
    %256 = vmatprep.subr.mxu0 0.0
    %257 = vmatpush1.msra.mxu0 0.0
    %258 = vmatprep.subr.mxu0 0.0
    %259 = vmatpush1.msra.mxu0 0.0
    %260 = vmatprep.subr.mxu0 0.0
    %261 = vmatpush1.msra.mxu0 0.0
    %262 = vmatprep.subr.mxu0 0.0
    %263 = vmatpush1.msra.mxu0 0.0
    %264 = vmatprep.subr.mxu0 0.0
    %265 = vmatpush1.msra.mxu0 0.0
    %266 = vmatprep.subr.mxu0 0.0
    %267 = vmatpush1.msra.mxu0 0.0
    %268 = vmatprep.subr.mxu0 0.0
    %269 = vmatpush1.msra.mxu0 0.0
    %270 = vmatprep.subr.mxu0 0.0
    %271 = vmatpush1.msra.mxu0 0.0
    %272 = vmatprep.subr.mxu0 0.0
    %273 = vmatpush1.msra.mxu0 0.0
    %274 = vmatprep.subr.mxu0 0.0
    %275 = vmatpush1.msra.mxu0 0.0
    %276 = vmatprep.subr.mxu0 0.0
    %277 = vmatpush1.msra.mxu0 0.0
    %278 = vmatprep.subr.mxu0 0.0
    %279 = vmatpush1.msra.mxu0 %v245
    %280 = vmatprep.subr.mxu0 0.0
    %281 = vmatpush1.msra.mxu0 %v244
    %282 = vmatprep.subr.mxu0 0.0
    %283 = vmatpush1.msra.mxu0 %v243
    %284 = vmatprep.subr.mxu0 0.0
    %285 = vmatpush1.msra.mxu0 %v242
    %286 = vmatprep.subr.mxu0 0.0
    %287 = vmatpush2.msra.mxu0 0.0
    %288 = vmatprep.subr.mxu0 0.0
    %289 = vmatpush2.msra.mxu0 0.0
    %290 = vmatprep.subr.mxu0 0.0
    %291 = vmatpush2.msra.mxu0 0.0
    %292 = vmatprep.subr.mxu0 0.0
    %293 = vmatpush2.msra.mxu0 0.0
    %294 = vmatprep.subr.mxu0 0.0
    %295 = vmatpush2.msra.mxu0 0.0
    %296 = vmatprep.subr.mxu0 0.0
    %297 = vmatpush2.msra.mxu0 0.0
    %298 = vmatprep.subr.mxu0 0.0
    %299 = vmatpush2.msra.mxu0 0.0
    %300 = vmatprep.subr.mxu0 0.0
    %301 = vmatpush2.msra.mxu0 0.0
    %302 = vmatprep.subr.mxu0 0.0
    %303 = vmatpush2.msra.mxu0 0.0
    %304 = vmatprep.subr.mxu0 0.0
    %305 = vmatpush2.msra.mxu0 0.0
    %306 = vmatprep.subr.mxu0 0.0
    %307 = vmatpush2.msra.mxu0 0.0
    %308 = vmatprep.subr.mxu0 0.0
    %309 = vmatpush2.msra.mxu0 0.0
    %310 = vmatprep.subr.mxu0 0.0
    %311 = vmatpush2.msra.mxu0 0.0
    %312 = vmatprep.subr.mxu0 0.0
    %313 = vmatpush2.msra.mxu0 0.0
    %314 = vmatprep.subr.mxu0 0.0
    %315 = vmatpush2.msra.mxu0 0.0
    %316 = vmatprep.subr.mxu0 0.0
    %317 = vmatpush2.msra.mxu0 0.0
    %318 = vmatprep.mubr.f32.mxu0 0.0
    %319 = vmatmul.mubr.f32.gmra.mxu0 %v252
    %v320 = vpop.f32.mrf.mxu0
    %v321 = vadd.f32 %v250, %v320
    %v322 = vpop.f32.mrf.mxu0
    %323 = vdwg.mxu0
    %324 = vmax.xlane.f32.xlu0 %v321
    %v325 = vpop.xlane.xlu0 %324
    %v326 = vsub.f32 %v321, %v325
    %v327 = vmul.f32 %v326, 1.442695
    %v328 = vpow.pop %v327
    %329 = vadd.xlane.f32.xlu0 %v328
    %v330 = vpop.xlane.xlu0 %329
    %v331 = vrcp.pop %v330
    %v332 = vmul.f32 %v328, %v331
    %333 = vst [vmem:[#allocation10] sm:$0xff] %v332
    // Predicated region
    $region38: #{tpu_custom_call.1} parent=1 // pred_check
      _
    $region39: #{tpu_custom_call.1} parent=1 // pred_check_branch
      %335 = sbr.rel (0) target = $region41
    $region40: #{tpu_custom_call.1} parent=1 // pred_region
      %s337 = ssub.s32 128, 128
      %338 = vsyncadd [#allocation4], %s337
      %s340 = sshll.u32 [#allocation10], 4
      %s341 = int_to_ptr.vmem [resolvable:$true] %s340
      %343 = dma.vmem_to_hbm [thread:$0]  %s341, 128, %s5, [#allocation4]
    $region41: #{tpu_custom_call.1} parent=1 // pred_fallthru
      _
    // Predicated region
    $region42: #{tpu_custom_call.1} parent=1 // pred_check
      _
    $region43: #{tpu_custom_call.1} parent=1 // pred_check_branch
      %345 = sbr.rel (0) target = $region45
    $region44: #{tpu_custom_call.1} parent=1 // pred_region
      %346 = dma.done [#allocation4], 128
    $region45: #{tpu_custom_call.1} parent=1 // pred_fallthru
      _
    %347 = vsyncpa [#allocation3], 1
    %348 = vsyncpa [#allocation6], 1
    %349 = vsyncpa [#allocation9], 1
    %350 = vsyncpa [#allocation4], 1

</llo_original>
